<compile_context>
chip_gen: v7x
topology: tpu7x:2x2x1
jax: 0.10.0
libtpu: 0.0.40
codegen_flags: <defaults>
</compile_context>

<pallas_src>
import math

import jax
import jax.numpy as jnp
from jax.experimental import pallas as pl
from jax.experimental.pallas import tpu as pltpu


def _latent_atten_attn_kernel(hm_ref, ws_ref, bs_ref, out_ref):
    """Full attention math for one block of TB batches (fused + folded)."""
    tb, m, d = hm_ref.shape
    hm = hm_ref[...]                                          # [TB, M, D] f32

    # Fused key-projection + score matmul:
    #   scores = (h_M @ W_k + b_k) @ query^T / sqrt(D) = h_M @ W_s + b_s
    scores = (
        jnp.dot(hm.reshape(tb * m, d), ws_ref[...],
                preferred_element_type=jnp.float32)
        + bs_ref[...]
    )                                                         # [TB*M, M]
    scores = scores.reshape(tb, m, m)                         # [TB, M(i), M(r)]

    # torch.softmax(atten, dim=1): normalize over the key-row axis (i).
    s = scores - jnp.max(scores, axis=1, keepdims=True)
    e = jnp.exp(s)
    p = e / jnp.sum(e, axis=1, keepdims=True)                 # exact divide

    # weighted = bmm(p, h_M); out = sum over dim 1. Folded algebraically:
    #   out[b, d] = sum_r (sum_i p[b, i, r]) * h_M[b, r, d]
    w = jnp.sum(p, axis=1)                                    # [TB, M]
    out_ref[...] = jnp.sum(w[:, :, None] * hm, axis=1)        # [TB, D]


def _latent_atten_rowsum_kernel(hm_ref, out_ref):
    """Collapsed path: softmax(dim=1) then sum(dim=1) cancel exactly, so the
    forward reduces to a row-sum of h_M.  Pure HBM-bandwidth-bound."""
    out_ref[...] = jnp.sum(hm_ref[...], axis=1)               # [TB, D]


def _choose_tb(B, block_b):
    """Largest multiple-of-8 batch tile <= block_b, preferring tiles that
    divide B (no padding) with an even number of grid blocks (v7x: 2 TCs)."""
    cap = max(8, min(block_b, B))
    cap -= cap % 8
    if cap < 8:
        cap = 8
    for tb in range(cap, 7, -8):           # no pad + even block count
        if B % tb == 0 and (B // tb) % 2 == 0:
            return tb
    for tb in range(cap, 7, -8):           # no pad
        if B % tb == 0:
            return tb
    return cap                              # ragged fallback (pads)


def latent_atten(h_M, h_R, W_k, b_k, W_q, b_q, *, block_b=512,
                 use_attention_math=True):
    """LatentAtten forward. h_M: [B, M, D], h_R: [M, D]; returns [B, D]."""
    B, M, D = h_M.shape

    TB = _choose_tb(B, block_b)
    n_blocks = pl.cdiv(B, TB)
    Bp = n_blocks * TB
    if Bp != B:
        # TODO(synk): clamp the last block's index_map instead of padding to
        # avoid an extra HBM pass when B is not a multiple of 8.
        hm = jnp.pad(h_M, ((0, Bp - B), (0, 0), (0, 0)))
    else:
        hm = h_M

    # VMEM budget: double-buffered h_M / out blocks + in-kernel intermediates,
    # capped at 48 MiB so the tiling stays safe on v7x's 64 MiB per-TC VMEM.
    hm_blk = TB * M * D * 4
    sc_blk = TB * M * M * 4
    need = 2 * hm_blk + 2 * TB * D * 4 + 4 * sc_blk + (D * M + M) * 4
    vmem_limit = int(min(48 * 1024 * 1024, max(2 * 1024 * 1024, 2 * need)))

    cparams = pltpu.CompilerParams(
        dimension_semantics=("parallel",),      # shard batch blocks across TCs
        vmem_limit_bytes=vmem_limit,
    )

    if not use_attention_math:
        out = pl.pallas_call(
            _latent_atten_rowsum_kernel,
            out_shape=jax.ShapeDtypeStruct((Bp, D), jnp.float32),
            grid=(n_blocks,),
            in_specs=[pl.BlockSpec((TB, M, D), lambda i: (i, 0, 0))],
            out_specs=pl.BlockSpec((TB, D), lambda i: (i, 0)),
            compiler_params=cparams,
        )(hm)
        return out[:B] if Bp != B else out

    # Batch-invariant precompute in plain XLA (one fusion, no extra kernel):
    #   query = h_R @ W_q + b_q
    #   W_s   = W_k @ (query / sqrt(D))^T          [D, M]
    #   b_s   = b_k @ (query / sqrt(D))^T          [1, M]
    inv_sqrt_d = 1.0 / math.sqrt(D)
    q_scaled = (h_R @ W_q + b_q) * inv_sqrt_d
    W_s = W_k @ q_scaled.T
    b_s = b_k @ q_scaled.T

    out = pl.pallas_call(
        _latent_atten_attn_kernel,
        out_shape=jax.ShapeDtypeStruct((Bp, D), jnp.float32),
        grid=(n_blocks,),
        in_specs=[
            pl.BlockSpec((TB, M, D), lambda i: (i, 0, 0)),   # h_M batch block
            pl.BlockSpec((D, M), lambda i: (0, 0)),          # W_s (grid-invariant)
            pl.BlockSpec((1, M), lambda i: (0, 0)),          # b_s (grid-invariant)
        ],
        out_specs=pl.BlockSpec((TB, D), lambda i: (i, 0)),   # 2-D output slab
        compiler_params=cparams,
    )(hm, W_s, b_s)
    return out[:B] if Bp != B else out


if __name__ == "__main__":
    B, M, D = 16, 8, 32   # 2 even batch blocks of 8 -> both v7x TCs busy

    root = jax.random.PRNGKey(0)
    k1, k2, k3, k4, k5, k6 = jax.random.split(root, 6)

    h_M = jax.random.normal(k1, (B, M, D), jnp.float32)
    h_R = jax.random.normal(k2, (M, D), jnp.float32)

    # Deterministic synthetic parameters (nn.Linear-style uniform init),
    # pre-transposed to [D_in, D_out].
    bound = 1.0 / math.sqrt(D)
    W_k = jax.random.uniform(k3, (D, D), jnp.float32, -bound, bound)
    b_k = jax.random.uniform(k4, (1, D), jnp.float32, -bound, bound)
    W_q = jax.random.uniform(k5, (D, D), jnp.float32, -bound, bound)
    b_q = jax.random.uniform(k6, (1, D), jnp.float32, -bound, bound)

    out_attn = latent_atten(h_M, h_R, W_k, b_k, W_q, b_q,
                            use_attention_math=True)
    out_fast = latent_atten(h_M, h_R, W_k, b_k, W_q, b_q,
                            use_attention_math=False)
    jax.block_until_ready((out_attn, out_fast))

    # Plain-JAX reference mirroring the torch forward.
    key_p = h_M @ W_k + b_k                               # [B, M, D]
    query_p = h_R @ W_q + b_q                             # [M, D]
    atten = jnp.einsum("bmd,rd->bmr", key_p, query_p) / math.sqrt(D)
    atten = jax.nn.softmax(atten, axis=1)                 # torch dim=1
    weighted = jnp.einsum("bmr,brd->bmd", atten, h_M)     # torch.bmm
    ref = jnp.sum(weighted, axis=1)                       # [B, D]

    assert out_attn.shape == (B, D) and out_fast.shape == (B, D)
    # Exact f32 math throughout (no approx reciprocal, no bf16 casts) ->
    # only ordinary f32 rounding separates the kernel from the reference.
    assert jnp.allclose(out_attn, ref, atol=2e-3, rtol=2e-3)
    assert jnp.allclose(out_fast, ref, atol=1e-4, rtol=1e-4)
    print("KERNEL_OK")
</pallas_src>

<mosaic_0001>
module attributes {stable_mosaic.version = 11 : i64} {
  func.func @_latent_atten_attn_kernel(%arg0: i32, %arg1: memref<8x8x32xf32, #tpu.memory_space<vmem>>, %arg2: memref<32x8xf32, #tpu.memory_space<vmem>>, %arg3: memref<1x8xf32, #tpu.memory_space<vmem>>, %arg4: memref<8x32xf32, #tpu.memory_space<vmem>>) attributes {dimension_semantics = [#tpu.dimension_semantics<parallel>], iteration_bounds = array<i64: 2>, scalar_prefetch = 0 : i64, scratch_operands = 0 : i64, tpu.core_type = #tpu.core_type<tc>, window_params = [{transform_indices = @transform_0, window_bounds = array<i64: 8, 8, 32>}, {pipeline_mode = #tpu.pipeline_mode<synchronous>, transform_indices = @transform_1, window_bounds = array<i64: 32, 8>}, {pipeline_mode = #tpu.pipeline_mode<synchronous>, transform_indices = @transform_2, window_bounds = array<i64: 1, 8>}, {transform_indices = @transform_3, window_bounds = array<i64: 8, 32>}]} {
    %c0 = arith.constant 0 : index
    %c0_0 = arith.constant 0 : index
    %c0_1 = arith.constant 0 : index
    %0 = vector.load %arg1[%c0, %c0_0, %c0_1] : memref<8x8x32xf32, #tpu.memory_space<vmem>>, vector<8x8x32xf32>
    %1 = vector.shape_cast %0 : vector<8x8x32xf32> to vector<64x32xf32>
    %c0_2 = arith.constant 0 : index
    %c0_3 = arith.constant 0 : index
    %2 = vector.load %arg2[%c0_2, %c0_3] : memref<32x8xf32, #tpu.memory_space<vmem>>, vector<32x8xf32>
    %cst = arith.constant dense<0.000000e+00> : vector<64x8xf32>
    %3 = tpu.matmul %1, %2, %cst {dimension_numbers = #tpu.dot_dimension_numbers<[1], [0], [0], [1], [0, 0, 1, 1], [], []>} : vector<64x32xf32>, vector<32x8xf32>, vector<64x8xf32> -> vector<64x8xf32>
    %c0_4 = arith.constant 0 : index
    %c0_5 = arith.constant 0 : index
    %4 = vector.load %arg3[%c0_4, %c0_5] : memref<1x8xf32, #tpu.memory_space<vmem>>, vector<1x8xf32>
    %5 = vector.broadcast %4 : vector<1x8xf32> to vector<64x8xf32>
    %6 = arith.addf %3, %5 : vector<64x8xf32>
    %7 = vector.shape_cast %6 : vector<64x8xf32> to vector<8x8x8xf32>
    %cst_6 = arith.constant dense<0xFF800000> : vector<8x8xf32>
    %8 = vector.multi_reduction <maximumf>, %7, %cst_6 [1] : vector<8x8x8xf32> to vector<8x8xf32>
    %9 = vector.shape_cast %8 : vector<8x8xf32> to vector<8x1x8xf32>
    %10 = vector.broadcast %9 : vector<8x1x8xf32> to vector<8x8x8xf32>
    %11 = arith.subf %7, %10 : vector<8x8x8xf32>
    %12 = math.exp %11 : vector<8x8x8xf32>
    %cst_7 = arith.constant dense<0.000000e+00> : vector<8x8xf32>
    %13 = vector.multi_reduction <add>, %12, %cst_7 [1] : vector<8x8x8xf32> to vector<8x8xf32>
    %14 = vector.shape_cast %13 : vector<8x8xf32> to vector<8x1x8xf32>
    %15 = vector.broadcast %14 : vector<8x1x8xf32> to vector<8x8x8xf32>
    %16 = arith.divf %12, %15 : vector<8x8x8xf32>
    %cst_8 = arith.constant dense<0.000000e+00> : vector<8x8xf32>
    %17 = vector.multi_reduction <add>, %16, %cst_8 [1] : vector<8x8x8xf32> to vector<8x8xf32>
    %18 = vector.shape_cast %17 : vector<8x8xf32> to vector<8x8x1xf32>
    %19 = vector.broadcast %18 : vector<8x8x1xf32> to vector<8x8x32xf32>
    %20 = arith.mulf %19, %0 : vector<8x8x32xf32>
    %cst_9 = arith.constant dense<0.000000e+00> : vector<8x32xf32>
    %21 = vector.multi_reduction <add>, %20, %cst_9 [1] : vector<8x8x32xf32> to vector<8x32xf32>
    %c0_10 = arith.constant 0 : index
    %c0_11 = arith.constant 0 : index
    %22 = vector.load %arg4[%c0_10, %c0_11] : memref<8x32xf32, #tpu.memory_space<vmem>>, vector<8x32xf32>
    tpu.vector_store %arg4[%c0_10, %c0_11], %21 {strides = array<i32>} : memref<8x32xf32, #tpu.memory_space<vmem>>, vector<8x32xf32>,
    return
  }
  func.func @transform_0(%arg0: i32) -> (i32, i32, i32) {
    %c0_i32 = arith.constant 0 : i32
    %c0_i32_0 = arith.constant 0 : i32
    %c0_i32_1 = arith.constant 0 : i32
    return %arg0, %c0_i32, %c0_i32_0 : i32, i32, i32
  }
  func.func @transform_1(%arg0: i32) -> (i32, i32) {
    %c0_i32 = arith.constant 0 : i32
    %c0_i32_0 = arith.constant 0 : i32
    %c0_i32_1 = arith.constant 0 : i32
    return %c0_i32, %c0_i32_0 : i32, i32
  }
  func.func @transform_2(%arg0: i32) -> (i32, i32) {
    %c0_i32 = arith.constant 0 : i32
    %c0_i32_0 = arith.constant 0 : i32
    %c0_i32_1 = arith.constant 0 : i32
    return %c0_i32, %c0_i32_0 : i32, i32
  }
  func.func @transform_3(%arg0: i32) -> (i32, i32) {
    %c0_i32 = arith.constant 0 : i32
    %c0_i32_0 = arith.constant 0 : i32
    return %arg0, %c0_i32 : i32, i32
  }
}

</mosaic_0001>

<llo_original>
// kernel: tpu_custom_call.1
$region0: #{tpu_custom_call.1}
  #allocation0 [shape = 'u32[]', space=smem, size = 0x4, offset = 0x4, fixed_abs, tag = 'smem constant byte address 0x4 - core index']
  #allocation1 [shape = 'u32[144,128]{1,0:T(1,128)}', space=vmem, size = 0x12000, scoped, tag = 'internal scratch']
  %s0 = inlined_call_operand.hbm [shape: f32[16,8,32], index: 0, kind: input, shape index: {}]
  %s1 = inlined_call_operand.vmem [shape: f32[32,8], index: 1, kind: input, shape index: {}]
  %s2 = inlined_call_operand.vmem [shape: f32[1,8], index: 2, kind: input, shape index: {}]
  %s3 = inlined_call_operand.hbm [shape: f32[16,32], index: 3, kind: output, shape index: {}]
  %s4 = sld [smem:[#allocation0]]
  $region49: #{tpu_custom_call.1} parent=0
    _
  %s6 = ssub.s32 1, %s4
  %s7 = scalar_select 0, %s6, %s4
  $region1: #{tpu_custom_call.1} parent=0
    #allocation2 [shape = 'u8[65536]{0}', space=vmem, size = 0x10000, scoped, tag = 'input window, operand 0']
    #allocation3 [shape = 's32[2]{0}', space=sflag, size = 0x8, scoped, tag = 'scoped memory for tpu_custom_call.1']
    #allocation4 [shape = 's32[2]{0}', space=sflag, size = 0x8, scoped, tag = 'scoped memory for tpu_custom_call.1']
    #allocation5 [shape = 'u8[8192]{0}', space=vmem, size = 0x2000, scoped, tag = 'output window, operand 0']
    %8 = vsyncpa [#allocation3], 0
    %s9 = scalar_lea.sflag [#allocation3], 1
    %10 = vsyncpa %s9, 0
    %11 = vsyncpa [#allocation4], 0
    %s12 = scalar_lea.sflag [#allocation4], 1
    %13 = vsyncpa %s12, 0
    loop: start=0, step=1, limit=4
    $region2: #{tpu_custom_call.1} parent=1 // loop_pre_header
      _
    $region3: #{tpu_custom_call.1} parent=1 // loop_header
      %s15 = sphi 0, %s19
      %p16 = scmp.ge.s32.totalorder %s15, 4
      %s25 = sphi 0, %s27
      %s28 = sphi 0, %s25
      %s29 = sphi 0, %s28
      %s45 = sphi 0, %s29
      %s49 = sphi 0, %s49
      %s51 = sphi 0, %s49
      %s52 = sphi 0, %s51
      %s66 = sphi 0, %s52
      %s70 = sphi 0, %s70
      %s72 = sphi 0, %s70
      %s73 = sphi 0, %s72
      %s87 = sphi 0, %s73
      %s93 = sphi 0, %s95
      %s96 = sphi 0, %s93
      %s97 = sphi 0, %s96
      %s113 = sphi 0, %s97
    $region4: #{tpu_custom_call.1} parent=1 // loop_header_branch
      %18 = sbr.rel (%p16) target = $region8
    $region5: #{tpu_custom_call.1} parent=1 // loop_body
      %s20 = ssub.s32 %s15, 1
      %s21 = ssub.s32 %s15, 2
      %s22 = sadd.s32 %s15, 1
      %s23 = ssub.s32 %s15, %s22
      %p24 = scmp.eq.s32.totalorder %s23, 0
      %s26 = sadd.s32 %s25, 1
      %s27 = scalar_select %p24, %s25, %s26
      %p30 = pneg %p24
      %p31 = scmp.eq.s32.totalorder %s15, 1
      %p32 = por %p30, %p31
      %p33 = scmp.ne.s32.totalorder %s25, %s28
      %p34 = scmp.eq.s32.totalorder %s15, 0
      %p35 = por %p33, %p34
      %p36 = scmp.ne.s32.totalorder %s25, %s28
      %p37 = scmp.eq.s32.totalorder %s20, 1
      %p38 = por %p36, %p37
      %p39 = scmp.ne.s32.totalorder %s28, %s29
      %p40 = scmp.eq.s32.totalorder %s20, 0
      %p41 = por %p39, %p40
      %p42 = scmp.ne.s32.totalorder %s28, %s29
      %p43 = scmp.eq.s32.totalorder %s21, 1
      %p44 = por %p42, %p43
      %p46 = scmp.ne.s32.totalorder %s29, %s45
      %p47 = scmp.eq.s32.totalorder %s21, 0
      %p48 = por %p46, %p47
      %s50 = sadd.s32 %s49, 1
      %p53 = scmp.eq.s32.totalorder %s15, 1
      %p54 = scmp.ne.s32.totalorder %s49, %s51
      %p55 = scmp.eq.s32.totalorder %s15, 0
      %p56 = por %p54, %p55
      %p57 = scmp.ne.s32.totalorder %s49, %s51
      %p58 = scmp.eq.s32.totalorder %s20, 1
      %p59 = por %p57, %p58
      %p60 = scmp.ne.s32.totalorder %s51, %s52
      %p61 = scmp.eq.s32.totalorder %s20, 0
      %p62 = por %p60, %p61
      %p63 = scmp.ne.s32.totalorder %s51, %s52
      %p64 = scmp.eq.s32.totalorder %s21, 1
      %p65 = por %p63, %p64
      %p67 = scmp.ne.s32.totalorder %s52, %s66
      %p68 = scmp.eq.s32.totalorder %s21, 0
      %p69 = por %p67, %p68
      %s71 = sadd.s32 %s70, 1
      %p74 = scmp.eq.s32.totalorder %s15, 1
      %p75 = scmp.ne.s32.totalorder %s70, %s72
      %p76 = scmp.eq.s32.totalorder %s15, 0
      %p77 = por %p75, %p76
      %p78 = scmp.ne.s32.totalorder %s70, %s72
      %p79 = scmp.eq.s32.totalorder %s20, 1
      %p80 = por %p78, %p79
      %p81 = scmp.ne.s32.totalorder %s72, %s73
      %p82 = scmp.eq.s32.totalorder %s20, 0
      %p83 = por %p81, %p82
      %p84 = scmp.ne.s32.totalorder %s72, %s73
      %p85 = scmp.eq.s32.totalorder %s21, 1
      %p86 = por %p84, %p85
      %p88 = scmp.ne.s32.totalorder %s73, %s87
      %p89 = scmp.eq.s32.totalorder %s21, 0
      %p90 = por %p88, %p89
      %s91 = ssub.s32 %s15, %s22
      %p92 = scmp.eq.s32.totalorder %s91, 0
      %s94 = sadd.s32 %s93, 1
      %s95 = scalar_select %p92, %s93, %s94
      %p98 = pneg %p92
      %p99 = scmp.eq.s32.totalorder %s15, 1
      %p100 = por %p98, %p99
      %p101 = scmp.ne.s32.totalorder %s93, %s96
      %p102 = scmp.eq.s32.totalorder %s15, 0
      %p103 = por %p101, %p102
      %p104 = scmp.ne.s32.totalorder %s93, %s96
      %p105 = scmp.eq.s32.totalorder %s20, 1
      %p106 = por %p104, %p105
      %p107 = scmp.ne.s32.totalorder %s96, %s97
      %p108 = scmp.eq.s32.totalorder %s20, 0
      %p109 = por %p107, %p108
      %p110 = scmp.ne.s32.totalorder %s96, %s97
      %p111 = scmp.eq.s32.totalorder %s21, 1
      %p112 = por %p110, %p111
      %p114 = scmp.ne.s32.totalorder %s97, %s113
      %p115 = scmp.eq.s32.totalorder %s21, 0
      %p116 = por %p114, %p115
      %p117 = scmp.le.s32.totalorder 1, %s15
      %p118 = scmp.lt.s32.totalorder %s15, 3
      %p119 = pnand %p117, %p118
      %p120 = pneg %p119
      // Predicated region
      $region9: #{tpu_custom_call.1} parent=5 // pred_check
        _
      $region10: #{tpu_custom_call.1} parent=5 // pred_check_branch
        %122 = sbr.rel (%p119) target = $region12
      $region11: #{tpu_custom_call.1} parent=5 // pred_region
        %s123 = ssub.s32 %s15, 1
        // Predicated region
        $region13: #{tpu_custom_call.1} parent=11 // pred_check
          %p124 = pneg %p62
        $region14: #{tpu_custom_call.1} parent=11 // pred_check_branch
          %126 = sbr.rel (%p124) target = $region16
        $region15: #{tpu_custom_call.1} parent=11 // pred_region
          _
        $region16: #{tpu_custom_call.1} parent=11 // pred_fallthru
          _
        // Predicated region
        $region17: #{tpu_custom_call.1} parent=11 // pred_check
          %p127 = pneg %p83
        $region18: #{tpu_custom_call.1} parent=11 // pred_check_branch
          %129 = sbr.rel (%p127) target = $region20
        $region19: #{tpu_custom_call.1} parent=11 // pred_region
          _
        $region20: #{tpu_custom_call.1} parent=11 // pred_fallthru
          _
      $region12: #{tpu_custom_call.1} parent=5 // pred_fallthru
        _
      %p130 = scmp.lt.s32.totalorder %s15, 2
      // Predicated region
      $region21: #{tpu_custom_call.1} parent=5 // pred_check
        %p131 = pneg %p130
      $region22: #{tpu_custom_call.1} parent=5 // pred_check_branch
        %133 = sbr.rel (%p131) target = $region24
      $region23: #{tpu_custom_call.1} parent=5 // pred_region
        // Predicated region
        $region25: #{tpu_custom_call.1} parent=23 // pred_check
          %p134 = pneg %p35
        $region26: #{tpu_custom_call.1} parent=23 // pred_check_branch
          %136 = sbr.rel (%p134) target = $region28
        $region27: #{tpu_custom_call.1} parent=23 // pred_region
          %s137 = sand.u32 %s25, 1
          %s138 = scalar_lea.sflag [#allocation3], %s137
          %s139 = sand.u32 %s25, 1
          %s140 = smul.addr %s139, 64
          %s141 = scalar_lea.vmem [#allocation2], %s140
          %s142 = smul.u32 8, %s15
          %s144 = ssub.s32 1024, 1024
          %145 = vsyncadd %s138, %s144
          %s146 = smul.addr %s142, 128
          %s147 = scalar_lea.hbm %s0, %s146
          %s148 = sshll.u32 %s141, 4
          %s149 = int_to_ptr.vmem [resolvable:$true] %s148
          %154 = dma.hbm_to_vmem [thread:$0]  %s147, 1024, %s149, %s138, 128, 128, 8
        $region28: #{tpu_custom_call.1} parent=23 // pred_fallthru
          _
      $region24: #{tpu_custom_call.1} parent=5 // pred_fallthru
        _
      %p155 = scmp.le.s32.totalorder 1, %s15
      %p156 = scmp.lt.s32.totalorder %s15, 3
      %p157 = pnand %p155, %p156
      %p158 = pneg %p157
      // Predicated region
      $region29: #{tpu_custom_call.1} parent=5 // pred_check
        _
      $region30: #{tpu_custom_call.1} parent=5 // pred_check_branch
        %160 = sbr.rel (%p157) target = $region32
      $region31: #{tpu_custom_call.1} parent=5 // pred_region
        %s161 = ssub.s32 %s15, 1
        %s162 = sand.u32 %s28, 1
        %s163 = scalar_lea.sflag [#allocation3], %s162
        %s164 = sand.u32 %s28, 1
        %s165 = smul.addr %s164, 64
        %s166 = scalar_lea.vmem [#allocation2], %s165
        // Predicated region
        $region33: #{tpu_custom_call.1} parent=31 // pred_check
          %p167 = pneg %p41
        $region34: #{tpu_custom_call.1} parent=31 // pred_check_branch
          %169 = sbr.rel (%p167) target = $region36
        $region35: #{tpu_custom_call.1} parent=31 // pred_region
          %170 = dma.done %s163, 1024
        $region36: #{tpu_custom_call.1} parent=31 // pred_fallthru
          _
        %s171 = sand.u32 %s28, 1
        %s172 = scalar_lea.sflag [#allocation3], %s171
        %s173 = sand.u32 %s28, 1
        %s174 = smul.addr %s173, 64
        %s175 = scalar_lea.vmem [#allocation2], %s174
        %p176 = pneg %p41
        %p177 = pneg %p38
        %p178 = pneg %p62
        %p179 = pneg %p59
        %p180 = pneg %p83
        %p181 = pneg %p80
        %p182 = pneg %p109
        %p183 = pneg %p106
        %s184 = sand.u32 %s96, 1
        %s185 = scalar_lea.sflag [#allocation4], %s184
        %s186 = sand.u32 %s96, 1
        %s187 = smul.addr %s186, 8
        %s188 = scalar_lea.vmem [#allocation5], %s187
        %s189 = smul.u32 8, %s20
        %v190 = vld [vmem:[%s166] sm:$0xff]
        %v191 = vld [vmem:[%s166 + $0x8] sm:$0xff]
        %v192 = vld [vmem:[%s166 + $0x10] sm:$0xff]
        %v193 = vld [vmem:[%s166 + $0x18] sm:$0xff]
        %v194 = vld [vmem:[%s166 + $0x20] sm:$0xff]
        %v195 = vld [vmem:[%s166 + $0x28] sm:$0xff]
        %v196 = vld [vmem:[%s166 + $0x30] sm:$0xff]
        %v197 = vld [vmem:[%s166 + $0x38] sm:$0xff]
        %v198 = vld [vmem:[%s1] sm:$0xff]
        %v199 = vld [vmem:[%s1 + $0x8] sm:$0xff]
        %v200 = vld [vmem:[%s1 + $0x10] sm:$0xff]
        %v201 = vld [vmem:[%s1 + $0x18] sm:$0xff]
        %v202 = vld [vmem:[%s2] sm:$0x1]
        %v204 = vlaneseq
        %v205 = vshrl.u32 %v204, 7
        %v206 = vsub.s32 0, %v205
        %v207 = vrot.slane %v202, %v206
        %vm209 = vcmask 261120
        %v211 = vsel %vm209, %v190, 0
        %v214 = vsel %vm209, %v191, 0
        %v217 = vsel %vm209, %v192, 0
        %v220 = vsel %vm209, %v193, 0
        %v223 = vsel %vm209, %v194, 0
        %v226 = vsel %vm209, %v195, 0
        %v229 = vsel %vm209, %v196, 0
        %v232 = vsel %vm209, %v197, 0
        %234 = vmatprep.subr.mxu0 0.0
        %235 = vmatpush1.msra.mxu0 %v198
        %236 = vmatprep.subr.mxu0 0.0
        %237 = vmatpush1.msra.mxu0 %v199
        %238 = vmatprep.subr.mxu0 0.0
        %239 = vmatpush1.msra.mxu0 %v200
        %240 = vmatprep.subr.mxu0 0.0
        %241 = vmatpush1.msra.mxu0 %v201
        %242 = vmatprep.subr.mxu0 0.0
        %243 = vmatpush1.msra.mxu0 0.0
        %244 = vmatprep.subr.mxu0 0.0
        %245 = vmatpush1.msra.mxu0 0.0
        %246 = vmatprep.subr.mxu0 0.0
        %247 = vmatpush1.msra.mxu0 0.0
        %248 = vmatprep.subr.mxu0 0.0
        %249 = vmatpush1.msra.mxu0 0.0
        %250 = vmatprep.subr.mxu0 0.0
        %251 = vmatpush1.msra.mxu0 0.0
        %252 = vmatprep.subr.mxu0 0.0
        %253 = vmatpush1.msra.mxu0 0.0
        %254 = vmatprep.subr.mxu0 0.0
        %255 = vmatpush1.msra.mxu0 0.0
        %256 = vmatprep.subr.mxu0 0.0
        %257 = vmatpush1.msra.mxu0 0.0
        %258 = vmatprep.subr.mxu0 0.0
        %259 = vmatpush1.msra.mxu0 0.0
        %260 = vmatprep.subr.mxu0 0.0
        %261 = vmatpush1.msra.mxu0 0.0
        %262 = vmatprep.subr.mxu0 0.0
        %263 = vmatpush1.msra.mxu0 0.0
        %264 = vmatprep.subr.mxu0 0.0
        %265 = vmatpush1.msra.mxu0 0.0
        %266 = vmatprep.subr.mxu0 0.0
        %267 = vmatpush1.msra.mxu0 0.0
        %268 = vmatprep.subr.mxu0 0.0
        %269 = vmatpush1.msra.mxu0 0.0
        %270 = vmatprep.subr.mxu0 0.0
        %271 = vmatpush1.msra.mxu0 0.0
        %272 = vmatprep.subr.mxu0 0.0
        %273 = vmatpush1.msra.mxu0 0.0
        %274 = vmatprep.subr.mxu0 0.0
        %275 = vmatpush1.msra.mxu0 0.0
        %276 = vmatprep.subr.mxu0 0.0
        %277 = vmatpush1.msra.mxu0 0.0
        %278 = vmatprep.subr.mxu0 0.0
        %279 = vmatpush1.msra.mxu0 0.0
        %280 = vmatprep.subr.mxu0 0.0
        %281 = vmatpush1.msra.mxu0 0.0
        %282 = vmatprep.subr.mxu0 0.0
        %283 = vmatpush1.msra.mxu0 0.0
        %284 = vmatprep.subr.mxu0 0.0
        %285 = vmatpush1.msra.mxu0 0.0
        %286 = vmatprep.subr.mxu0 0.0
        %287 = vmatpush1.msra.mxu0 0.0
        %288 = vmatprep.subr.mxu0 0.0
        %289 = vmatpush1.msra.mxu0 0.0
        %290 = vmatprep.subr.mxu0 0.0
        %291 = vmatpush1.msra.mxu0 0.0
        %292 = vmatprep.subr.mxu0 0.0
        %293 = vmatpush1.msra.mxu0 0.0
        %294 = vmatprep.subr.mxu0 0.0
        %295 = vmatpush1.msra.mxu0 0.0
        %296 = vmatprep.subr.mxu0 0.0
        %297 = vmatpush1.msra.mxu0 0.0
        %298 = vmatprep.mubr.f32.mxu0 0.0
        %299 = vmatmul.mubr.f32.gmra.mrb[0].mxu0 %v211
        %v300 = vpop.f32.mrb[0].mxu0
        %v301 = vadd.f32 %v207, %v300
        %v302 = vpop.f32.mrb[0].mxu0
        %303 = vmatprep.mubr.f32.mxu0 0.0
        %304 = vmatmul.mubr.f32.gmra.mrb[0].mxu0 %v214
        %v305 = vpop.f32.mrb[0].mxu0
        %v306 = vadd.f32 %v207, %v305
        %v307 = vpop.f32.mrb[0].mxu0
        %308 = vmatprep.mubr.f32.mxu0 0.0
        %309 = vmatmul.mubr.f32.gmra.mrb[0].mxu0 %v217
        %v310 = vpop.f32.mrb[0].mxu0
        %v311 = vadd.f32 %v207, %v310
        %v312 = vpop.f32.mrb[0].mxu0
        %313 = vmatprep.mubr.f32.mxu0 0.0
        %314 = vmatmul.mubr.f32.gmra.mrb[0].mxu0 %v220
        %v315 = vpop.f32.mrb[0].mxu0
        %v316 = vadd.f32 %v207, %v315
        %v317 = vpop.f32.mrb[0].mxu0
        %318 = vmatprep.mubr.f32.mxu0 0.0
        %319 = vmatmul.mubr.f32.gmra.mrb[0].mxu0 %v223
        %v320 = vpop.f32.mrb[0].mxu0
        %v321 = vadd.f32 %v207, %v320
        %v322 = vpop.f32.mrb[0].mxu0
        %323 = vmatprep.mubr.f32.mxu0 0.0
        %324 = vmatmul.mubr.f32.gmra.mrb[0].mxu0 %v226
        %v325 = vpop.f32.mrb[0].mxu0
        %v326 = vadd.f32 %v207, %v325
        %v327 = vpop.f32.mrb[0].mxu0
        %328 = vmatprep.mubr.f32.mxu0 0.0
        %329 = vmatmul.mubr.f32.gmra.mrb[0].mxu0 %v229
        %v330 = vpop.f32.mrb[0].mxu0
        %v331 = vadd.f32 %v207, %v330
        %v332 = vpop.f32.mrb[0].mxu0
        %333 = vmatprep.mubr.f32.mxu0 0.0
        %334 = vmatmul.mubr.f32.gmra.mrb[0].mxu0 %v232
        %v335 = vpop.f32.mrb[0].mxu0
        %v336 = vadd.f32 %v207, %v335
        %v337 = vpop.f32.mrb[0].mxu0
        %338 = vdwg.mxu0
        %vm339 = vcmask 64512
        %v340 = vsel %vm339, %v301, -inf
        %v341 = vrot.slane %v340, 4
        %v342 = vmax.f32 %v340, %v341
        %v343 = vrot.slane %v342, 2
        %v344 = vmax.f32 %v342, %v343
        %v345 = vrot.slane %v344, 1
        %v346 = vmax.f32 %v344, %v345
        %v347 = vsel %vm339, %v306, -inf
        %v348 = vrot.slane %v347, 4
        %v349 = vmax.f32 %v347, %v348
        %v350 = vrot.slane %v349, 2
        %v351 = vmax.f32 %v349, %v350
        %v352 = vrot.slane %v351, 1
        %v353 = vmax.f32 %v351, %v352
        %v354 = vsel %vm339, %v311, -inf
        %v355 = vrot.slane %v354, 4
        %v356 = vmax.f32 %v354, %v355
        %v357 = vrot.slane %v356, 2
        %v358 = vmax.f32 %v356, %v357
        %v359 = vrot.slane %v358, 1
        %v360 = vmax.f32 %v358, %v359
        %v361 = vsel %vm339, %v316, -inf
        %v362 = vrot.slane %v361, 4
        %v363 = vmax.f32 %v361, %v362
        %v364 = vrot.slane %v363, 2
        %v365 = vmax.f32 %v363, %v364
        %v366 = vrot.slane %v365, 1
        %v367 = vmax.f32 %v365, %v366
        %v368 = vsel %vm339, %v321, -inf
        %v369 = vrot.slane %v368, 4
        %v370 = vmax.f32 %v368, %v369
        %v371 = vrot.slane %v370, 2
        %v372 = vmax.f32 %v370, %v371
        %v373 = vrot.slane %v372, 1
        %v374 = vmax.f32 %v372, %v373
        %v375 = vsel %vm339, %v326, -inf
        %v376 = vrot.slane %v375, 4
        %v377 = vmax.f32 %v375, %v376
        %v378 = vrot.slane %v377, 2
        %v379 = vmax.f32 %v377, %v378
        %v380 = vrot.slane %v379, 1
        %v381 = vmax.f32 %v379, %v380
        %v382 = vsel %vm339, %v331, -inf
        %v383 = vrot.slane %v382, 4
        %v384 = vmax.f32 %v382, %v383
        %v385 = vrot.slane %v384, 2
        %v386 = vmax.f32 %v384, %v385
        %v387 = vrot.slane %v386, 1
        %v388 = vmax.f32 %v386, %v387
        %v389 = vsel %vm339, %v336, -inf
        %v390 = vrot.slane %v389, 4
        %v391 = vmax.f32 %v389, %v390
        %v392 = vrot.slane %v391, 2
        %v393 = vmax.f32 %v391, %v392
        %v394 = vrot.slane %v393, 1
        %v395 = vmax.f32 %v393, %v394
        %v396 = vsub.f32 %v301, %v346
        %v397 = vsub.f32 %v306, %v353
        %v398 = vsub.f32 %v311, %v360
        %v399 = vsub.f32 %v316, %v367
        %v400 = vsub.f32 %v321, %v374
        %v401 = vsub.f32 %v326, %v381
        %v402 = vsub.f32 %v331, %v388
        %v403 = vsub.f32 %v336, %v395
        %v404 = vmul.f32 %v396, 1.442695
        %v405 = vpow.pop %v404
        %v406 = vmul.f32 %v397, 1.442695
        %v407 = vpow.pop %v406
        %v408 = vmul.f32 %v398, 1.442695
        %v409 = vpow.pop %v408
        %v410 = vmul.f32 %v399, 1.442695
        %v411 = vpow.pop %v410
        %v412 = vmul.f32 %v400, 1.442695
        %v413 = vpow.pop %v412
        %v414 = vmul.f32 %v401, 1.442695
        %v415 = vpow.pop %v414
        %v416 = vmul.f32 %v402, 1.442695
        %v417 = vpow.pop %v416
        %v418 = vmul.f32 %v403, 1.442695
        %v419 = vpow.pop %v418
        %v420 = vsel %vm339, %v405, 0.0
        %v421 = vrot.slane %v420, 4
        %v422 = vadd.f32 %v420, %v421
        %v423 = vrot.slane %v422, 2
        %v424 = vadd.f32 %v422, %v423
        %v425 = vrot.slane %v424, 1
        %v426 = vadd.f32 %v424, %v425
        %v427 = vsel %vm339, %v407, 0.0
        %v428 = vrot.slane %v427, 4
        %v429 = vadd.f32 %v427, %v428
        %v430 = vrot.slane %v429, 2
        %v431 = vadd.f32 %v429, %v430
        %v432 = vrot.slane %v431, 1
        %v433 = vadd.f32 %v431, %v432
        %v434 = vsel %vm339, %v409, 0.0
        %v435 = vrot.slane %v434, 4
        %v436 = vadd.f32 %v434, %v435
        %v437 = vrot.slane %v436, 2
        %v438 = vadd.f32 %v436, %v437
        %v439 = vrot.slane %v438, 1
        %v440 = vadd.f32 %v438, %v439
        %v441 = vsel %vm339, %v411, 0.0
        %v442 = vrot.slane %v441, 4
        %v443 = vadd.f32 %v441, %v442
        %v444 = vrot.slane %v443, 2
        %v445 = vadd.f32 %v443, %v444
        %v446 = vrot.slane %v445, 1
        %v447 = vadd.f32 %v445, %v446
        %v448 = vsel %vm339, %v413, 0.0
        %v449 = vrot.slane %v448, 4
        %v450 = vadd.f32 %v448, %v449
        %v451 = vrot.slane %v450, 2
        %v452 = vadd.f32 %v450, %v451
        %v453 = vrot.slane %v452, 1
        %v454 = vadd.f32 %v452, %v453
        %v455 = vsel %vm339, %v415, 0.0
        %v456 = vrot.slane %v455, 4
        %v457 = vadd.f32 %v455, %v456
        %v458 = vrot.slane %v457, 2
        %v459 = vadd.f32 %v457, %v458
        %v460 = vrot.slane %v459, 1
        %v461 = vadd.f32 %v459, %v460
        %v462 = vsel %vm339, %v417, 0.0
        %v463 = vrot.slane %v462, 4
        %v464 = vadd.f32 %v462, %v463
        %v465 = vrot.slane %v464, 2
        %v466 = vadd.f32 %v464, %v465
        %v467 = vrot.slane %v466, 1
        %v468 = vadd.f32 %v466, %v467
        %v469 = vsel %vm339, %v419, 0.0
        %v470 = vrot.slane %v469, 4
        %v471 = vadd.f32 %v469, %v470
        %v472 = vrot.slane %v471, 2
        %v473 = vadd.f32 %v471, %v472
        %v474 = vrot.slane %v473, 1
        %v475 = vadd.f32 %v473, %v474
        %v476 = vrcp.pop %v426
        %v477 = vmul.f32 %v405, %v476
        %v478 = vrcp.pop %v433
        %v479 = vmul.f32 %v407, %v478
        %v480 = vrcp.pop %v440
        %v481 = vmul.f32 %v409, %v480
        %v482 = vrcp.pop %v447
        %v483 = vmul.f32 %v411, %v482
        %v484 = vrcp.pop %v454
        %v485 = vmul.f32 %v413, %v484
        %v486 = vrcp.pop %v461
        %v487 = vmul.f32 %v415, %v486
        %v488 = vrcp.pop %v468
        %v489 = vmul.f32 %v417, %v488
        %v490 = vrcp.pop %v475
        %v491 = vmul.f32 %v419, %v490
        %v492 = vsel %vm339, %v477, 0.0
        %v493 = vrot.slane %v492, 4
        %v494 = vadd.f32 %v492, %v493
        %v495 = vrot.slane %v494, 2
        %v496 = vadd.f32 %v494, %v495
        %v497 = vrot.slane %v496, 1
        %v498 = vadd.f32 %v496, %v497
        %v499 = vsel %vm339, %v479, 0.0
        %v500 = vrot.slane %v499, 4
        %v501 = vadd.f32 %v499, %v500
        %v502 = vrot.slane %v501, 2
        %v503 = vadd.f32 %v501, %v502
        %v504 = vrot.slane %v503, 1
        %v505 = vadd.f32 %v503, %v504
        %v506 = vsel %vm339, %v481, 0.0
        %v507 = vrot.slane %v506, 4
        %v508 = vadd.f32 %v506, %v507
        %v509 = vrot.slane %v508, 2
        %v510 = vadd.f32 %v508, %v509
        %v511 = vrot.slane %v510, 1
        %v512 = vadd.f32 %v510, %v511
        %v513 = vsel %vm339, %v483, 0.0
        %v514 = vrot.slane %v513, 4
        %v515 = vadd.f32 %v513, %v514
        %v516 = vrot.slane %v515, 2
        %v517 = vadd.f32 %v515, %v516
        %v518 = vrot.slane %v517, 1
        %v519 = vadd.f32 %v517, %v518
        %v520 = vsel %vm339, %v485, 0.0
        %v521 = vrot.slane %v520, 4
        %v522 = vadd.f32 %v520, %v521
        %v523 = vrot.slane %v522, 2
        %v524 = vadd.f32 %v522, %v523
        %v525 = vrot.slane %v524, 1
        %v526 = vadd.f32 %v524, %v525
        %v527 = vsel %vm339, %v487, 0.0
        %v528 = vrot.slane %v527, 4
        %v529 = vadd.f32 %v527, %v528
        %v530 = vrot.slane %v529, 2
        %v531 = vadd.f32 %v529, %v530
        %v532 = vrot.slane %v531, 1
        %v533 = vadd.f32 %v531, %v532
        %v534 = vsel %vm339, %v489, 0.0
        %v535 = vrot.slane %v534, 4
        %v536 = vadd.f32 %v534, %v535
        %v537 = vrot.slane %v536, 2
        %v538 = vadd.f32 %v536, %v537
        %v539 = vrot.slane %v538, 1
        %v540 = vadd.f32 %v538, %v539
        %v541 = vsel %vm339, %v491, 0.0
        %v542 = vrot.slane %v541, 4
        %v543 = vadd.f32 %v541, %v542
        %v544 = vrot.slane %v543, 2
        %v545 = vadd.f32 %v543, %v544
        %v546 = vrot.slane %v545, 1
        %v547 = vadd.f32 %v545, %v546
        %549 = vbcast.lane.b32.xlu0 %v498, 256
        %v550 = vpop.permute.xlu0 %549
        %552 = vbcast.lane.b32.xlu0 %v505, 256
        %v553 = vpop.permute.xlu0 %552
        %555 = vbcast.lane.b32.xlu0 %v512, 256
        %v556 = vpop.permute.xlu0 %555
        %558 = vbcast.lane.b32.xlu0 %v519, 256
        %v559 = vpop.permute.xlu0 %558
        %561 = vbcast.lane.b32.xlu0 %v526, 256
        %v562 = vpop.permute.xlu0 %561
        %564 = vbcast.lane.b32.xlu0 %v533, 256
        %v565 = vpop.permute.xlu0 %564
        %567 = vbcast.lane.b32.xlu0 %v540, 256
        %v568 = vpop.permute.xlu0 %567
        %570 = vbcast.lane.b32.xlu0 %v547, 256
        %v571 = vpop.permute.xlu0 %570
        %v572 = vmul.f32 %v550, %v190
        %v573 = vmul.f32 %v553, %v191
        %v574 = vmul.f32 %v556, %v192
        %v575 = vmul.f32 %v559, %v193
        %v576 = vmul.f32 %v562, %v194
        %v577 = vmul.f32 %v565, %v195
        %v578 = vmul.f32 %v568, %v196
        %v579 = vmul.f32 %v571, %v197
        %v580 = vsel %vm209, %v572, 0.0
        %v581 = vrot.slane %v580, 4
        %v582 = vadd.f32 %v580, %v581
        %v583 = vrot.slane %v582, 2
        %v584 = vadd.f32 %v582, %v583
        %v585 = vrot.slane %v584, 1
        %v586 = vadd.f32 %v584, %v585
        %v587 = vsel %vm209, %v573, 0.0
        %v588 = vrot.slane %v587, 4
        %v589 = vadd.f32 %v587, %v588
        %v590 = vrot.slane %v589, 2
        %v591 = vadd.f32 %v589, %v590
        %v592 = vrot.slane %v591, 1
        %v593 = vadd.f32 %v591, %v592
        %v594 = vsel %vm209, %v574, 0.0
        %v595 = vrot.slane %v594, 4
        %v596 = vadd.f32 %v594, %v595
        %v597 = vrot.slane %v596, 2
        %v598 = vadd.f32 %v596, %v597
        %v599 = vrot.slane %v598, 1
        %v600 = vadd.f32 %v598, %v599
        %v601 = vsel %vm209, %v575, 0.0
        %v602 = vrot.slane %v601, 4
        %v603 = vadd.f32 %v601, %v602
        %v604 = vrot.slane %v603, 2
        %v605 = vadd.f32 %v603, %v604
        %v606 = vrot.slane %v605, 1
        %v607 = vadd.f32 %v605, %v606
        %v608 = vsel %vm209, %v576, 0.0
        %v609 = vrot.slane %v608, 4
        %v610 = vadd.f32 %v608, %v609
        %v611 = vrot.slane %v610, 2
        %v612 = vadd.f32 %v610, %v611
        %v613 = vrot.slane %v612, 1
        %v614 = vadd.f32 %v612, %v613
        %v615 = vsel %vm209, %v577, 0.0
        %v616 = vrot.slane %v615, 4
        %v617 = vadd.f32 %v615, %v616
        %v618 = vrot.slane %v617, 2
        %v619 = vadd.f32 %v617, %v618
        %v620 = vrot.slane %v619, 1
        %v621 = vadd.f32 %v619, %v620
        %v622 = vsel %vm209, %v578, 0.0
        %v623 = vrot.slane %v622, 4
        %v624 = vadd.f32 %v622, %v623
        %v625 = vrot.slane %v624, 2
        %v626 = vadd.f32 %v624, %v625
        %v627 = vrot.slane %v626, 1
        %v628 = vadd.f32 %v626, %v627
        %v629 = vsel %vm209, %v579, 0.0
        %v630 = vrot.slane %v629, 4
        %v631 = vadd.f32 %v629, %v630
        %v632 = vrot.slane %v631, 2
        %v633 = vadd.f32 %v631, %v632
        %v634 = vrot.slane %v633, 1
        %v635 = vadd.f32 %v633, %v634
        %vm644 = vcmask 1041409
        %v645 = vsel %vm644, %v593, %v586
        %vm646 = vcmask 1042434
        %v647 = vsel %vm646, %v600, %v645
        %vm648 = vcmask 1043459
        %v649 = vsel %vm648, %v607, %v647
        %vm650 = vcmask 1044484
        %v651 = vsel %vm650, %v614, %v649
        %vm652 = vcmask 1045509
        %v653 = vsel %vm652, %v621, %v651
        %vm654 = vcmask 1046534
        %v655 = vsel %vm654, %v628, %v653
        %vm656 = vcmask 1047559
        %v657 = vsel %vm656, %v635, %v655
        %659 = vst.msk [vmem:[%s188] sm:$0xff] %vm209, %v657
        %s660 = sand.u32 %s96, 1
        %s661 = scalar_lea.sflag [#allocation4], %s660
        %s662 = sand.u32 %s96, 1
        %s663 = smul.addr %s662, 8
        %s664 = scalar_lea.vmem [#allocation5], %s663
        // Predicated region
        $region37: #{tpu_custom_call.1} parent=31 // pred_check
          %p665 = pneg %p106
        $region38: #{tpu_custom_call.1} parent=31 // pred_check_branch
          %667 = sbr.rel (%p665) target = $region40
        $region39: #{tpu_custom_call.1} parent=31 // pred_region
          %s669 = ssub.s32 128, 128
          %670 = vsyncadd %s661, %s669
          %s671 = smul.addr %s20, 128
          %s672 = scalar_lea.hbm %s3, %s671
          %s674 = sshll.u32 %s664, 4
          %s675 = int_to_ptr.vmem [resolvable:$true] %s674
          %677 = dma.vmem_to_hbm [thread:$0]  %s675, 128, %s672, %s661
        $region40: #{tpu_custom_call.1} parent=31 // pred_fallthru
          _
      $region32: #{tpu_custom_call.1} parent=5 // pred_fallthru
        _
      %p678 = scmp.le.s32.totalorder 2, %s15
      // Predicated region
      $region41: #{tpu_custom_call.1} parent=5 // pred_check
        %p679 = pneg %p678
      $region42: #{tpu_custom_call.1} parent=5 // pred_check_branch
        %681 = sbr.rel (%p679) target = $region44
      $region43: #{tpu_custom_call.1} parent=5 // pred_region
        %s682 = ssub.s32 %s15, 2
        // Predicated region
        $region45: #{tpu_custom_call.1} parent=43 // pred_check
          %p683 = pneg %p112
        $region46: #{tpu_custom_call.1} parent=43 // pred_check_branch
          %685 = sbr.rel (%p683) target = $region48
        $region47: #{tpu_custom_call.1} parent=43 // pred_region
          %s686 = sand.u32 %s97, 1
          %s687 = scalar_lea.sflag [#allocation4], %s686
          %s688 = sand.u32 %s97, 1
          %s689 = smul.addr %s688, 8
          %s690 = scalar_lea.vmem [#allocation5], %s689
          %691 = dma.done %s687, 128
        $region48: #{tpu_custom_call.1} parent=43 // pred_fallthru
          _
      $region44: #{tpu_custom_call.1} parent=5 // pred_fallthru
        _
    $region6: #{tpu_custom_call.1} parent=1 // loop_footer
      %s19 = sadd.s32 1, %s15
    $region7: #{tpu_custom_call.1} parent=1 // loop_footer_branch
      %14 = sbr.rel target = $region3
    $region8: #{tpu_custom_call.1} parent=1 // loop_exit
      _
    %692 = vsyncpa [#allocation3], 1
    %s693 = scalar_lea.sflag [#allocation3], 1
    %694 = vsyncpa %s693, 1
    %695 = vsyncpa [#allocation4], 1
    %s696 = scalar_lea.sflag [#allocation4], 1
    %697 = vsyncpa %s696, 1

</llo_original>
